<compile_context>
chip_gen: v5e
topology: v5e:2x2
jax: 0.10.0
libtpu: 0.0.40
codegen_flags: <defaults>
</compile_context>

<pallas_src>
import numpy as np
import jax
import jax.numpy as jnp
from jax.experimental import pallas as pl
from jax.experimental.pallas import tpu as pltpu

# ------------------------- synthetic hparams -------------------------
REF_ENC_FILTERS = [4, 8, 16]      # K = 3 conv layers
N_MEL_CHANNELS = 16
E = 32
HIDDEN = E // 2                   # GRU hidden size = 16
BN_EPS = 1e-5


def _conv_out(L):
    # Conv2d(kernel=3, stride=2, pad=1) output length (== calculate_channels step).
    return (L - 3 + 2 * 1) // 2 + 1


def _r8(x):
    return (x + 7) // 8 * 8


# ------------------------- host-side static plumbing -------------------------
def _im2col_first(x):
    """Layer-1 (Cin=1) im2col on the HBM input: [N, H, W] -> [N*Ho*Wo, 9]."""
    N, H, W = x.shape
    Ho, Wo = _conv_out(H), _conv_out(W)
    xp = jnp.pad(x, ((0, 0), (1, 1), (1, 1)))
    taps = [xp[:, kh:kh + 2 * Ho:2, kw:kw + 2 * Wo:2]
            for kh in range(3) for kw in range(3)]
    return jnp.stack(taps, axis=-1).reshape(N * Ho * Wo, 9)


def _make_sel_stack(N, H, W, gru_order=False):
    """Row-stacked 0/1 tap-selection matrix for a k=3, s=2, p=1 conv.

    S[(t*M_out + m), r] = 1 iff tap t of output row m reads input row r (padding ->
    all-zero row).  Input rows r are ordered (n, h, w).  Output rows m are ordered
    (n, oh, ow); with gru_order=True they are ordered (ow, oh, n) so the conv-3
    output drops straight into GRU-input layout with a single lane-concat.
    """
    Ho, Wo = _conv_out(H), _conv_out(W)
    M_out, M_in = N * Ho * Wo, N * H * W
    S = np.zeros((9 * M_out, M_in), np.float32)
    for n in range(N):
        for oh in range(Ho):
            for ow in range(Wo):
                m = (ow * Ho + oh) * N + n if gru_order else (n * Ho + oh) * Wo + ow
                for kh in range(3):
                    for kw in range(3):
                        h, w = 2 * oh + kh - 1, 2 * ow + kw - 1
                        if 0 <= h < H and 0 <= w < W:
                            S[(kh * 3 + kw) * M_out + m, (n * H + h) * W + w] = 1.0
    return S


# ------------------------- full forward -------------------------
def reference_encoder(inputs, params):
    """inputs: [N, Ty, n_mels]  ->  [N, HIDDEN] final GRU hidden state."""
    N, Ty, n_mels = inputs.shape
    # PyTorch: inputs.view(N, 1, -1, n_mels) -> NCHW with Cin=1, H=Ty, W=n_mels.
    H1, W1 = Ty, n_mels
    H2, W2 = _conv_out(H1), _conv_out(W1)
    H3, W3 = _conv_out(H2), _conv_out(W2)
    T_out, W_out = _conv_out(H3), _conv_out(W3)
    c1, c2, c3 = REF_ENC_FILTERS
    d_in = c3 * W_out
    TN = T_out * N
    f32, bf16 = jnp.float32, jnp.bfloat16

    (w1, _b1, g1, be1), (w2, _b2, g2, be2), (w3, _b3, g3, be3) = params["convs"]
    # Conv biases intentionally unused: with training-mode BatchNorm the per-channel
    # constant bias is cancelled exactly by the batch-mean subtraction.
    # TODO(synk): re-add the conv biases if BN ever switches to eval-mode running stats.

    # ---- operand 1: layer-1 im2col patches (data-dependent; bf16 for the MXU) ----
    p1 = _im2col_first(inputs).astype(bf16)                           # [N*H2*W2, 9]

    # ---- operand 2: packed 0/1 tap-selection blob (exact in bf16) ----
    M1, M2, M3 = N * H2 * W2, N * H3 * W3, N * T_out * W_out
    s2 = _make_sel_stack(N, H2, W2)                                   # [9*M2, M1]
    s3 = _make_sel_stack(N, H3, W3, gru_order=True)                   # [9*M3, M2]
    o_s2, o_s3 = 0, _r8(9 * M2)
    sel_np = np.zeros((_r8(o_s3 + 9 * M3), M1), np.float32)
    sel_np[o_s2:o_s2 + 9 * M2, :M1] = s2
    sel_np[o_s3:o_s3 + 9 * M3, :M2] = s3
    sel = jnp.asarray(sel_np, dtype=bf16)

    # ---- operand 3: bf16 matmul-weight blob (conv kernels + GRU mats), 8-row aligned ----
    gw = 3 * HIDDEN                                                    # blob width = 48
    o_w1 = 0
    o_w2 = o_w1 + _r8(9 * 1)
    o_w3 = o_w2 + _r8(9 * c1)
    o_wih = o_w3 + _r8(9 * c2)
    o_whh = o_wih + _r8(d_in)
    n_wrows = o_whh + _r8(HIDDEN)
    # GRU input-weight rows reordered (c, w) -> (w, c) so the in-kernel lane-concat of
    # the conv-3 w-blocks feeds it directly (folds the old esel matmuls away).
    perm = (np.arange(c3)[None, :] * W_out + np.arange(W_out)[:, None]).reshape(-1)
    wmat = jnp.zeros((n_wrows, gw), f32)
    wmat = wmat.at[o_w1:o_w1 + 9, :c1].set(w1.reshape(9, c1))
    wmat = wmat.at[o_w2:o_w2 + 9 * c1, :c2].set(w2.reshape(9 * c1, c2))
    wmat = wmat.at[o_w3:o_w3 + 9 * c2, :c3].set(w3.reshape(9 * c2, c3))
    wmat = wmat.at[o_wih:o_wih + d_in, :].set(params["w_ih"][perm, :])
    wmat = wmat.at[o_whh:o_whh + HIDDEN, :].set(params["w_hh"])
    wmat = wmat.astype(bf16)

    # ---- operand 4: f32 vector blob (BN gamma/beta + GRU biases), one (8, 48) tile ----
    vecs = jnp.zeros((8, gw), f32)
    vecs = vecs.at[0, :c1].set(g1).at[1, :c1].set(be1)
    vecs = vecs.at[2, :c2].set(g2).at[3, :c2].set(be2)
    vecs = vecs.at[4, :c3].set(g3).at[5, :c3].set(be3)
    vecs = vecs.at[6, :].set(params["b_ih"]).at[7, :].set(params["b_hh"])

    def kernel(p1_ref, sel_ref, wmat_ref, vecs_ref, o_ref):
        def bn_relu(y, row):
            # Training-mode BatchNorm over rows (= N,H,W) per channel; two-pass var.
            c = y.shape[1]
            gamma = vecs_ref[row:row + 1, :c]
            beta = vecs_ref[row + 1:row + 2, :c]
            inv_m = 1.0 / y.shape[0]
            mu = jnp.sum(y, axis=0, keepdims=True) * inv_m
            d = y - mu
            var = jnp.sum(d * d, axis=0, keepdims=True) * inv_m
            return jnp.maximum(gamma * (d * jax.lax.rsqrt(var + BN_EPS)) + beta, 0.0)

        def conv_bn_relu(x, s_off, m_in, m_out, cin, cout, w_off, bn_row):
            # One batched selection matmul (all 9 taps stacked row-wise), aligned
            # sublane slices + lane-concat into im2col patches, then ONE weight matmul.
            s = sel_ref[s_off:s_off + 9 * m_out, :m_in]
            p = jnp.dot(s, x.astype(bf16), preferred_element_type=f32)   # [9*m_out, cin]
            patch = jnp.concatenate(
                [p[t * m_out:(t + 1) * m_out, :] for t in range(9)], axis=-1)
            w = wmat_ref[w_off:w_off + 9 * cin, :cout]
            y = jnp.dot(patch.astype(bf16), w, preferred_element_type=f32)
            return bn_relu(y, bn_row)

        # ---- conv stack (activations: rows = flattened (n,h,w), lanes = channels) ----
        y = jnp.dot(p1_ref[...], wmat_ref[o_w1:o_w1 + 9, :c1],
                    preferred_element_type=f32)                          # [M1, c1]
        y = bn_relu(y, 0)
        y = conv_bn_relu(y, o_s2, M1, M2, c1, c2, o_w2, 2)               # [M2, c2]
        y = conv_bn_relu(y, o_s3, M2, M3, c2, c3, o_w3, 4)               # [M3, c3], rows (w,t,n)

        # ---- GRU input: lane-concat per-w row blocks -> [T*N, W_out*c3], lanes (w,c) ----
        x_gru = jnp.concatenate(
            [y[wq * TN:(wq + 1) * TN, :] for wq in range(W_out)], axis=-1)
        wih = wmat_ref[o_wih:o_wih + d_in, :]
        whh = wmat_ref[o_whh:o_whh + HIDDEN, :]
        b_ih = vecs_ref[6:7, :]
        b_hh = vecs_ref[7:8, :]
        # Input projection hoisted out of the recurrence (one matmul for all steps).
        gi = jnp.dot(x_gru.astype(bf16), wih, preferred_element_type=f32) + b_ih

        # ---- GRU recurrence, fully unrolled over T' (tiny, static); gates (r, z, n) ----
        h = jnp.zeros((N, HIDDEN), f32)
        for t in range(T_out):
            git = gi[t * N:(t + 1) * N, :]
            if t == 0:
                gh = b_hh                      # h == 0 exactly -> W_hh @ h == 0
            else:
                gh = jnp.dot(h.astype(bf16), whh, preferred_element_type=f32) + b_hh
            r = jax.nn.sigmoid(git[:, :HIDDEN] + gh[:, :HIDDEN])
            z = jax.nn.sigmoid(git[:, HIDDEN:2 * HIDDEN] + gh[:, HIDDEN:2 * HIDDEN])
            n = jnp.tanh(git[:, 2 * HIDDEN:] + r * gh[:, 2 * HIDDEN:])
            h = (1.0 - z) * n + z * h

        # single store: final hidden state == PyTorch out.squeeze(0)
        o_ref[...] = h

    # TODO(synk): self.gru.flatten_parameters() is a CUDA memory-layout hint; no-op here.
    # TODO(synk): no parallel grid axis (BN batch stats + GRU recurrence are global /
    # sequential at this size); on v7x shard independent encoder instances across the
    # two TensorCores with a leading "parallel" grid axis if more work is available.
    return pl.pallas_call(
        kernel,
        out_shape=jax.ShapeDtypeStruct((N, HIDDEN), f32),
        in_specs=[pl.BlockSpec(memory_space=pltpu.MemorySpace.VMEM)] * 4,
        out_specs=pl.BlockSpec(memory_space=pltpu.MemorySpace.VMEM),
    )(p1, sel, wmat, vecs)


# ------------------------- params -------------------------
def init_params(key):
    params = {"convs": []}
    filters = [1] + REF_ENC_FILTERS
    for i in range(len(REF_ENC_FILTERS)):
        key, k1, k2, k3, k4 = jax.random.split(key, 5)
        cin, cout = filters[i], filters[i + 1]
        params["convs"].append((
            jax.random.normal(k1, (3, 3, cin, cout), jnp.float32) * 0.1,   # conv weight (HWIO)
            jax.random.normal(k2, (cout,), jnp.float32) * 0.1,             # conv bias (cancelled by train-mode BN)
            1.0 + 0.1 * jax.random.normal(k3, (cout,), jnp.float32),       # BN gamma
            0.1 * jax.random.normal(k4, (cout,), jnp.float32),             # BN beta
        ))
    L = N_MEL_CHANNELS
    for _ in range(len(REF_ENC_FILTERS)):
        L = _conv_out(L)
    d_in = REF_ENC_FILTERS[-1] * L
    key, k1, k2, k3, k4 = jax.random.split(key, 5)
    params["w_ih"] = jax.random.normal(k1, (d_in, 3 * HIDDEN), jnp.float32) * 0.1
    params["w_hh"] = jax.random.normal(k2, (HIDDEN, 3 * HIDDEN), jnp.float32) * 0.1
    params["b_ih"] = jax.random.normal(k3, (3 * HIDDEN,), jnp.float32) * 0.1
    params["b_hh"] = jax.random.normal(k4, (3 * HIDDEN,), jnp.float32) * 0.1
    return params


if __name__ == "__main__":
    key = jax.random.PRNGKey(0)
    params = init_params(key)
    # inputs: [N, Ty, n_mels] = [2, 16, 16]
    x = jax.random.normal(jax.random.PRNGKey(0), (2, 16, N_MEL_CHANNELS), jnp.float32)
    out = jax.jit(lambda inp: reference_encoder(inp, params))(x)
    jax.block_until_ready(out)
    assert out.shape == (2, HIDDEN) and out.dtype == jnp.float32
    assert bool(jnp.all(jnp.isfinite(out)))
    print("KERNEL_OK")
</pallas_src>

<mosaic_0001>
module attributes {stable_mosaic.version = 11 : i64} {
  func.func @kernel(%arg0: memref<128x9xbf16, #tpu.memory_space<vmem>>, %arg1: memref<360x128xbf16, #tpu.memory_space<vmem>>, %arg2: memref<176x48xbf16, #tpu.memory_space<vmem>>, %arg3: memref<8x48xf32, #tpu.memory_space<vmem>>, %arg4: memref<2x16xf32, #tpu.memory_space<vmem>>) attributes {dimension_semantics = [], scalar_prefetch = 0 : i64, scratch_operands = 0 : i64, tpu.core_type = #tpu.core_type<tc>} {
    %c0 = arith.constant 0 : index
    %c0_0 = arith.constant 0 : index
    %0 = vector.load %arg0[%c0, %c0_0] : memref<128x9xbf16, #tpu.memory_space<vmem>>, vector<128x9xbf16>
    %c0_1 = arith.constant 0 : index
    %c0_2 = arith.constant 0 : index
    %1 = vector.load %arg2[%c0_1, %c0_2] : memref<176x48xbf16, #tpu.memory_space<vmem>>, vector<9x4xbf16>
    %cst = arith.constant dense<0.000000e+00> : vector<128x4xf32>
    %2 = tpu.matmul %0, %1, %cst {dimension_numbers = #tpu.dot_dimension_numbers<[1], [0], [0], [1], [0, 0, 1, 1], [], []>} : vector<128x9xbf16>, vector<9x4xbf16>, vector<128x4xf32> -> vector<128x4xf32>
    %c0_3 = arith.constant 0 : index
    %c0_4 = arith.constant 0 : index
    %3 = vector.load %arg3[%c0_3, %c0_4] : memref<8x48xf32, #tpu.memory_space<vmem>>, vector<1x4xf32>
    %c1 = arith.constant 1 : index
    %c0_5 = arith.constant 0 : index
    %4 = vector.load %arg3[%c1, %c0_5] : memref<8x48xf32, #tpu.memory_space<vmem>>, vector<1x4xf32>
    %cst_6 = arith.constant dense<0.000000e+00> : vector<4xf32>
    %5 = vector.multi_reduction <add>, %2, %cst_6 [0] : vector<128x4xf32> to vector<4xf32>
    %6 = vector.shape_cast %5 : vector<4xf32> to vector<1x4xf32>
    %cst_7 = arith.constant 7.812500e-03 : f32
    %7 = vector.broadcast %cst_7 : f32 to vector<1x4xf32>
    %8 = arith.mulf %6, %7 : vector<1x4xf32>
    %9 = vector.broadcast %8 : vector<1x4xf32> to vector<128x4xf32>
    %10 = arith.subf %2, %9 : vector<128x4xf32>
    %11 = arith.mulf %10, %10 : vector<128x4xf32>
    %cst_8 = arith.constant dense<0.000000e+00> : vector<4xf32>
    %12 = vector.multi_reduction <add>, %11, %cst_8 [0] : vector<128x4xf32> to vector<4xf32>
    %13 = vector.shape_cast %12 : vector<4xf32> to vector<1x4xf32>
    %cst_9 = arith.constant 7.812500e-03 : f32
    %14 = vector.broadcast %cst_9 : f32 to vector<1x4xf32>
    %15 = arith.mulf %13, %14 : vector<1x4xf32>
    %cst_10 = arith.constant 9.99999974E-6 : f32
    %16 = vector.broadcast %cst_10 : f32 to vector<1x4xf32>
    %17 = arith.addf %15, %16 : vector<1x4xf32>
    %18 = math.rsqrt %17 : vector<1x4xf32>
    %19 = vector.broadcast %18 : vector<1x4xf32> to vector<128x4xf32>
    %20 = arith.mulf %10, %19 : vector<128x4xf32>
    %21 = vector.broadcast %3 : vector<1x4xf32> to vector<128x4xf32>
    %22 = arith.mulf %21, %20 : vector<128x4xf32>
    %23 = vector.broadcast %4 : vector<1x4xf32> to vector<128x4xf32>
    %24 = arith.addf %22, %23 : vector<128x4xf32>
    %cst_11 = arith.constant 0.000000e+00 : f32
    %25 = vector.broadcast %cst_11 : f32 to vector<128x4xf32>
    %26 = arith.maximumf %24, %25 : vector<128x4xf32>
    %c0_12 = arith.constant 0 : index
    %c0_13 = arith.constant 0 : index
    %27 = vector.load %arg1[%c0_12, %c0_13] : memref<360x128xbf16, #tpu.memory_space<vmem>>, vector<288x128xbf16>
    %28 = arith.truncf %26 : vector<128x4xf32> to vector<128x4xbf16>
    %cst_14 = arith.constant dense<0.000000e+00> : vector<288x4xf32>
    %29 = tpu.matmul %27, %28, %cst_14 {dimension_numbers = #tpu.dot_dimension_numbers<[1], [0], [0], [1], [0, 0, 1, 1], [], []>} : vector<288x128xbf16>, vector<128x4xbf16>, vector<288x4xf32> -> vector<288x4xf32>
    %30 = vector.extract_strided_slice %29 {offsets = [0, 0], sizes = [32, 4], strides = [1, 1]} : vector<288x4xf32> to vector<32x4xf32>
    %31 = vector.extract_strided_slice %29 {offsets = [32, 0], sizes = [32, 4], strides = [1, 1]} : vector<288x4xf32> to vector<32x4xf32>
    %32 = vector.extract_strided_slice %29 {offsets = [64, 0], sizes = [32, 4], strides = [1, 1]} : vector<288x4xf32> to vector<32x4xf32>
    %33 = vector.extract_strided_slice %29 {offsets = [96, 0], sizes = [32, 4], strides = [1, 1]} : vector<288x4xf32> to vector<32x4xf32>
    %34 = vector.extract_strided_slice %29 {offsets = [128, 0], sizes = [32, 4], strides = [1, 1]} : vector<288x4xf32> to vector<32x4xf32>
    %35 = vector.extract_strided_slice %29 {offsets = [160, 0], sizes = [32, 4], strides = [1, 1]} : vector<288x4xf32> to vector<32x4xf32>
    %36 = vector.extract_strided_slice %29 {offsets = [192, 0], sizes = [32, 4], strides = [1, 1]} : vector<288x4xf32> to vector<32x4xf32>
    %37 = vector.extract_strided_slice %29 {offsets = [224, 0], sizes = [32, 4], strides = [1, 1]} : vector<288x4xf32> to vector<32x4xf32>
    %38 = vector.extract_strided_slice %29 {offsets = [256, 0], sizes = [32, 4], strides = [1, 1]} : vector<288x4xf32> to vector<32x4xf32>
    %39 = tpu.concatenate %30, %31, %32, %33, %34, %35, %36, %37, %38 in 1 : vector<32x4xf32>, vector<32x4xf32>, vector<32x4xf32>, vector<32x4xf32>, vector<32x4xf32>, vector<32x4xf32>, vector<32x4xf32>, vector<32x4xf32>, vector<32x4xf32> -> vector<32x36xf32>
    %c16 = arith.constant 16 : index
    %c0_15 = arith.constant 0 : index
    %40 = vector.load %arg2[%c16, %c0_15] : memref<176x48xbf16, #tpu.memory_space<vmem>>, vector<36x8xbf16>
    %41 = arith.truncf %39 : vector<32x36xf32> to vector<32x36xbf16>
    %cst_16 = arith.constant dense<0.000000e+00> : vector<32x8xf32>
    %42 = tpu.matmul %41, %40, %cst_16 {dimension_numbers = #tpu.dot_dimension_numbers<[1], [0], [0], [1], [0, 0, 1, 1], [], []>} : vector<32x36xbf16>, vector<36x8xbf16>, vector<32x8xf32> -> vector<32x8xf32>
    %c2 = arith.constant 2 : index
    %c0_17 = arith.constant 0 : index
    %43 = vector.load %arg3[%c2, %c0_17] : memref<8x48xf32, #tpu.memory_space<vmem>>, vector<1x8xf32>
    %c3 = arith.constant 3 : index
    %c0_18 = arith.constant 0 : index
    %44 = vector.load %arg3[%c3, %c0_18] : memref<8x48xf32, #tpu.memory_space<vmem>>, vector<1x8xf32>
    %cst_19 = arith.constant dense<0.000000e+00> : vector<8xf32>
    %45 = vector.multi_reduction <add>, %42, %cst_19 [0] : vector<32x8xf32> to vector<8xf32>
    %46 = vector.shape_cast %45 : vector<8xf32> to vector<1x8xf32>
    %cst_20 = arith.constant 3.125000e-02 : f32
    %47 = vector.broadcast %cst_20 : f32 to vector<1x8xf32>
    %48 = arith.mulf %46, %47 : vector<1x8xf32>
    %49 = vector.broadcast %48 : vector<1x8xf32> to vector<32x8xf32>
    %50 = arith.subf %42, %49 : vector<32x8xf32>
    %51 = arith.mulf %50, %50 : vector<32x8xf32>
    %cst_21 = arith.constant dense<0.000000e+00> : vector<8xf32>
    %52 = vector.multi_reduction <add>, %51, %cst_21 [0] : vector<32x8xf32> to vector<8xf32>
    %53 = vector.shape_cast %52 : vector<8xf32> to vector<1x8xf32>
    %cst_22 = arith.constant 3.125000e-02 : f32
    %54 = vector.broadcast %cst_22 : f32 to vector<1x8xf32>
    %55 = arith.mulf %53, %54 : vector<1x8xf32>
    %cst_23 = arith.constant 9.99999974E-6 : f32
    %56 = vector.broadcast %cst_23 : f32 to vector<1x8xf32>
    %57 = arith.addf %55, %56 : vector<1x8xf32>
    %58 = math.rsqrt %57 : vector<1x8xf32>
    %59 = vector.broadcast %58 : vector<1x8xf32> to vector<32x8xf32>
    %60 = arith.mulf %50, %59 : vector<32x8xf32>
    %61 = vector.broadcast %43 : vector<1x8xf32> to vector<32x8xf32>
    %62 = arith.mulf %61, %60 : vector<32x8xf32>
    %63 = vector.broadcast %44 : vector<1x8xf32> to vector<32x8xf32>
    %64 = arith.addf %62, %63 : vector<32x8xf32>
    %cst_24 = arith.constant 0.000000e+00 : f32
    %65 = vector.broadcast %cst_24 : f32 to vector<32x8xf32>
    %66 = arith.maximumf %64, %65 : vector<32x8xf32>
    %c288 = arith.constant 288 : index
    %c0_25 = arith.constant 0 : index
    %67 = vector.load %arg1[%c288, %c0_25] : memref<360x128xbf16, #tpu.memory_space<vmem>>, vector<72x32xbf16>
    %68 = arith.truncf %66 : vector<32x8xf32> to vector<32x8xbf16>
    %cst_26 = arith.constant dense<0.000000e+00> : vector<72x8xf32>
    %69 = tpu.matmul %67, %68, %cst_26 {dimension_numbers = #tpu.dot_dimension_numbers<[1], [0], [0], [1], [0, 0, 1, 1], [], []>} : vector<72x32xbf16>, vector<32x8xbf16>, vector<72x8xf32> -> vector<72x8xf32>
    %70 = vector.extract_strided_slice %69 {offsets = [0, 0], sizes = [8, 8], strides = [1, 1]} : vector<72x8xf32> to vector<8x8xf32>
    %71 = vector.extract_strided_slice %69 {offsets = [8, 0], sizes = [8, 8], strides = [1, 1]} : vector<72x8xf32> to vector<8x8xf32>
    %72 = vector.extract_strided_slice %69 {offsets = [16, 0], sizes = [8, 8], strides = [1, 1]} : vector<72x8xf32> to vector<8x8xf32>
    %73 = vector.extract_strided_slice %69 {offsets = [24, 0], sizes = [8, 8], strides = [1, 1]} : vector<72x8xf32> to vector<8x8xf32>
    %74 = vector.extract_strided_slice %69 {offsets = [32, 0], sizes = [8, 8], strides = [1, 1]} : vector<72x8xf32> to vector<8x8xf32>
    %75 = vector.extract_strided_slice %69 {offsets = [40, 0], sizes = [8, 8], strides = [1, 1]} : vector<72x8xf32> to vector<8x8xf32>
    %76 = vector.extract_strided_slice %69 {offsets = [48, 0], sizes = [8, 8], strides = [1, 1]} : vector<72x8xf32> to vector<8x8xf32>
    %77 = vector.extract_strided_slice %69 {offsets = [56, 0], sizes = [8, 8], strides = [1, 1]} : vector<72x8xf32> to vector<8x8xf32>
    %78 = vector.extract_strided_slice %69 {offsets = [64, 0], sizes = [8, 8], strides = [1, 1]} : vector<72x8xf32> to vector<8x8xf32>
    %79 = tpu.concatenate %70, %71, %72, %73, %74, %75, %76, %77, %78 in 1 : vector<8x8xf32>, vector<8x8xf32>, vector<8x8xf32>, vector<8x8xf32>, vector<8x8xf32>, vector<8x8xf32>, vector<8x8xf32>, vector<8x8xf32>, vector<8x8xf32> -> vector<8x72xf32>
    %c56 = arith.constant 56 : index
    %c0_27 = arith.constant 0 : index
    %80 = vector.load %arg2[%c56, %c0_27] : memref<176x48xbf16, #tpu.memory_space<vmem>>, vector<72x16xbf16>
    %81 = arith.truncf %79 : vector<8x72xf32> to vector<8x72xbf16>
    %cst_28 = arith.constant dense<0.000000e+00> : vector<8x16xf32>
    %82 = tpu.matmul %81, %80, %cst_28 {dimension_numbers = #tpu.dot_dimension_numbers<[1], [0], [0], [1], [0, 0, 1, 1], [], []>} : vector<8x72xbf16>, vector<72x16xbf16>, vector<8x16xf32> -> vector<8x16xf32>
    %c4 = arith.constant 4 : index
    %c0_29 = arith.constant 0 : index
    %83 = vector.load %arg3[%c4, %c0_29] : memref<8x48xf32, #tpu.memory_space<vmem>>, vector<1x16xf32>
    %c5 = arith.constant 5 : index
    %c0_30 = arith.constant 0 : index
    %84 = vector.load %arg3[%c5, %c0_30] : memref<8x48xf32, #tpu.memory_space<vmem>>, vector<1x16xf32>
    %cst_31 = arith.constant dense<0.000000e+00> : vector<16xf32>
    %85 = vector.multi_reduction <add>, %82, %cst_31 [0] : vector<8x16xf32> to vector<16xf32>
    %86 = vector.shape_cast %85 : vector<16xf32> to vector<1x16xf32>
    %cst_32 = arith.constant 1.250000e-01 : f32
    %87 = vector.broadcast %cst_32 : f32 to vector<1x16xf32>
    %88 = arith.mulf %86, %87 : vector<1x16xf32>
    %89 = vector.broadcast %88 : vector<1x16xf32> to vector<8x16xf32>
    %90 = arith.subf %82, %89 : vector<8x16xf32>
    %91 = arith.mulf %90, %90 : vector<8x16xf32>
    %cst_33 = arith.constant dense<0.000000e+00> : vector<16xf32>
    %92 = vector.multi_reduction <add>, %91, %cst_33 [0] : vector<8x16xf32> to vector<16xf32>
    %93 = vector.shape_cast %92 : vector<16xf32> to vector<1x16xf32>
    %cst_34 = arith.constant 1.250000e-01 : f32
    %94 = vector.broadcast %cst_34 : f32 to vector<1x16xf32>
    %95 = arith.mulf %93, %94 : vector<1x16xf32>
    %cst_35 = arith.constant 9.99999974E-6 : f32
    %96 = vector.broadcast %cst_35 : f32 to vector<1x16xf32>
    %97 = arith.addf %95, %96 : vector<1x16xf32>
    %98 = math.rsqrt %97 : vector<1x16xf32>
    %99 = vector.broadcast %98 : vector<1x16xf32> to vector<8x16xf32>
    %100 = arith.mulf %90, %99 : vector<8x16xf32>
    %101 = vector.broadcast %83 : vector<1x16xf32> to vector<8x16xf32>
    %102 = arith.mulf %101, %100 : vector<8x16xf32>
    %103 = vector.broadcast %84 : vector<1x16xf32> to vector<8x16xf32>
    %104 = arith.addf %102, %103 : vector<8x16xf32>
    %cst_36 = arith.constant 0.000000e+00 : f32
    %105 = vector.broadcast %cst_36 : f32 to vector<8x16xf32>
    %106 = arith.maximumf %104, %105 : vector<8x16xf32>
    %107 = vector.extract_strided_slice %106 {offsets = [0, 0], sizes = [4, 16], strides = [1, 1]} : vector<8x16xf32> to vector<4x16xf32>
    %108 = vector.extract_strided_slice %106 {offsets = [4, 0], sizes = [4, 16], strides = [1, 1]} : vector<8x16xf32> to vector<4x16xf32>
    %109 = tpu.concatenate %107, %108 in 1 : vector<4x16xf32>, vector<4x16xf32> -> vector<4x32xf32>
    %c128 = arith.constant 128 : index
    %c0_37 = arith.constant 0 : index
    %110 = vector.load %arg2[%c128, %c0_37] : memref<176x48xbf16, #tpu.memory_space<vmem>>, vector<32x48xbf16>
    %c160 = arith.constant 160 : index
    %c0_38 = arith.constant 0 : index
    %111 = vector.load %arg2[%c160, %c0_38] : memref<176x48xbf16, #tpu.memory_space<vmem>>, vector<16x48xbf16>
    %c6 = arith.constant 6 : index
    %c0_39 = arith.constant 0 : index
    %112 = vector.load %arg3[%c6, %c0_39] : memref<8x48xf32, #tpu.memory_space<vmem>>, vector<1x48xf32>
    %c7 = arith.constant 7 : index
    %c0_40 = arith.constant 0 : index
    %113 = vector.load %arg3[%c7, %c0_40] : memref<8x48xf32, #tpu.memory_space<vmem>>, vector<1x48xf32>
    %114 = arith.truncf %109 : vector<4x32xf32> to vector<4x32xbf16>
    %cst_41 = arith.constant dense<0.000000e+00> : vector<4x48xf32>
    %115 = tpu.matmul %114, %110, %cst_41 {dimension_numbers = #tpu.dot_dimension_numbers<[1], [0], [0], [1], [0, 0, 1, 1], [], []>} : vector<4x32xbf16>, vector<32x48xbf16>, vector<4x48xf32> -> vector<4x48xf32>
    %116 = vector.broadcast %112 : vector<1x48xf32> to vector<4x48xf32>
    %117 = arith.addf %115, %116 : vector<4x48xf32>
    %cst_42 = arith.constant 0.000000e+00 : f32
    %118 = vector.broadcast %cst_42 : f32 to vector<2x16xf32>
    %119 = vector.extract_strided_slice %117 {offsets = [0, 0], sizes = [2, 48], strides = [1, 1]} : vector<4x48xf32> to vector<2x48xf32>
    %120 = vector.extract_strided_slice %119 {offsets = [0, 0], sizes = [2, 16], strides = [1, 1]} : vector<2x48xf32> to vector<2x16xf32>
    %121 = vector.extract_strided_slice %113 {offsets = [0, 0], sizes = [1, 16], strides = [1, 1]} : vector<1x48xf32> to vector<1x16xf32>
    %122 = vector.broadcast %121 : vector<1x16xf32> to vector<2x16xf32>
    %123 = arith.addf %120, %122 : vector<2x16xf32>
    %124 = arith.negf %123 : vector<2x16xf32>
    %125 = math.exp %124 : vector<2x16xf32>
    %cst_43 = arith.constant 1.000000e+00 : f32
    %126 = vector.broadcast %cst_43 : f32 to vector<2x16xf32>
    %127 = arith.addf %126, %125 : vector<2x16xf32>
    %128 = arith.divf %126, %127 : vector<2x16xf32>
    %129 = vector.extract_strided_slice %119 {offsets = [0, 16], sizes = [2, 16], strides = [1, 1]} : vector<2x48xf32> to vector<2x16xf32>
    %130 = vector.extract_strided_slice %113 {offsets = [0, 16], sizes = [1, 16], strides = [1, 1]} : vector<1x48xf32> to vector<1x16xf32>
    %131 = vector.broadcast %130 : vector<1x16xf32> to vector<2x16xf32>
    %132 = arith.addf %129, %131 : vector<2x16xf32>
    %133 = arith.negf %132 : vector<2x16xf32>
    %134 = math.exp %133 : vector<2x16xf32>
    %cst_44 = arith.constant 1.000000e+00 : f32
    %135 = vector.broadcast %cst_44 : f32 to vector<2x16xf32>
    %136 = arith.addf %135, %134 : vector<2x16xf32>
    %137 = arith.divf %135, %136 : vector<2x16xf32>
    %138 = vector.extract_strided_slice %119 {offsets = [0, 32], sizes = [2, 16], strides = [1, 1]} : vector<2x48xf32> to vector<2x16xf32>
    %139 = vector.extract_strided_slice %113 {offsets = [0, 32], sizes = [1, 16], strides = [1, 1]} : vector<1x48xf32> to vector<1x16xf32>
    %140 = vector.broadcast %139 : vector<1x16xf32> to vector<2x16xf32>
    %141 = arith.mulf %128, %140 : vector<2x16xf32>
    %142 = arith.addf %138, %141 : vector<2x16xf32>
    %143 = math.tanh %142 : vector<2x16xf32>
    %cst_45 = arith.constant 1.000000e+00 : f32
    %144 = vector.broadcast %cst_45 : f32 to vector<2x16xf32>
    %145 = arith.subf %144, %137 : vector<2x16xf32>
    %146 = arith.mulf %145, %143 : vector<2x16xf32>
    %147 = arith.mulf %137, %118 : vector<2x16xf32>
    %148 = arith.addf %146, %147 : vector<2x16xf32>
    %149 = vector.extract_strided_slice %117 {offsets = [2, 0], sizes = [2, 48], strides = [1, 1]} : vector<4x48xf32> to vector<2x48xf32>
    %150 = arith.truncf %148 : vector<2x16xf32> to vector<2x16xbf16>
    %cst_46 = arith.constant dense<0.000000e+00> : vector<2x48xf32>
    %151 = tpu.matmul %150, %111, %cst_46 {dimension_numbers = #tpu.dot_dimension_numbers<[1], [0], [0], [1], [0, 0, 1, 1], [], []>} : vector<2x16xbf16>, vector<16x48xbf16>, vector<2x48xf32> -> vector<2x48xf32>
    %152 = vector.broadcast %113 : vector<1x48xf32> to vector<2x48xf32>
    %153 = arith.addf %151, %152 : vector<2x48xf32>
    %154 = vector.extract_strided_slice %149 {offsets = [0, 0], sizes = [2, 16], strides = [1, 1]} : vector<2x48xf32> to vector<2x16xf32>
    %155 = vector.extract_strided_slice %153 {offsets = [0, 0], sizes = [2, 16], strides = [1, 1]} : vector<2x48xf32> to vector<2x16xf32>
    %156 = arith.addf %154, %155 : vector<2x16xf32>
    %157 = arith.negf %156 : vector<2x16xf32>
    %158 = math.exp %157 : vector<2x16xf32>
    %cst_47 = arith.constant 1.000000e+00 : f32
    %159 = vector.broadcast %cst_47 : f32 to vector<2x16xf32>
    %160 = arith.addf %159, %158 : vector<2x16xf32>
    %161 = arith.divf %159, %160 : vector<2x16xf32>
    %162 = vector.extract_strided_slice %149 {offsets = [0, 16], sizes = [2, 16], strides = [1, 1]} : vector<2x48xf32> to vector<2x16xf32>
    %163 = vector.extract_strided_slice %153 {offsets = [0, 16], sizes = [2, 16], strides = [1, 1]} : vector<2x48xf32> to vector<2x16xf32>
    %164 = arith.addf %162, %163 : vector<2x16xf32>
    %165 = arith.negf %164 : vector<2x16xf32>
    %166 = math.exp %165 : vector<2x16xf32>
    %cst_48 = arith.constant 1.000000e+00 : f32
    %167 = vector.broadcast %cst_48 : f32 to vector<2x16xf32>
    %168 = arith.addf %167, %166 : vector<2x16xf32>
    %169 = arith.divf %167, %168 : vector<2x16xf32>
    %170 = vector.extract_strided_slice %149 {offsets = [0, 32], sizes = [2, 16], strides = [1, 1]} : vector<2x48xf32> to vector<2x16xf32>
    %171 = vector.extract_strided_slice %153 {offsets = [0, 32], sizes = [2, 16], strides = [1, 1]} : vector<2x48xf32> to vector<2x16xf32>
    %172 = arith.mulf %161, %171 : vector<2x16xf32>
    %173 = arith.addf %170, %172 : vector<2x16xf32>
    %174 = math.tanh %173 : vector<2x16xf32>
    %cst_49 = arith.constant 1.000000e+00 : f32
    %175 = vector.broadcast %cst_49 : f32 to vector<2x16xf32>
    %176 = arith.subf %175, %169 : vector<2x16xf32>
    %177 = arith.mulf %176, %174 : vector<2x16xf32>
    %178 = arith.mulf %169, %148 : vector<2x16xf32>
    %179 = arith.addf %177, %178 : vector<2x16xf32>
    %c0_50 = arith.constant 0 : index
    %c0_51 = arith.constant 0 : index
    %180 = vector.load %arg4[%c0_50, %c0_51] : memref<2x16xf32, #tpu.memory_space<vmem>>, vector<2x16xf32>
    tpu.vector_store %arg4[%c0_50, %c0_51], %179 {strides = array<i32>} : memref<2x16xf32, #tpu.memory_space<vmem>>, vector<2x16xf32>,
    return
  }
}

</mosaic_0001>

<llo_original>
// kernel: _lambda_.1
$region0: #{_lambda_.1}
  #allocation0 [shape = 'u32[]', space=smem, size = 0x4, offset = 0x4, fixed_abs, tag = 'smem constant byte address 0x4 - core index']
  #allocation1 [shape = 'u32[72,128]{1,0:T(1,128)}', space=vmem, size = 0x9000, scoped, tag = 'internal scratch']
  %s0 = inlined_call_operand.vmem [shape: bf16[128,9], index: 0, kind: input, shape index: {}]
  %s1 = inlined_call_operand.vmem [shape: bf16[360,128], index: 1, kind: input, shape index: {}]
  %s2 = inlined_call_operand.vmem [shape: bf16[176,48], index: 2, kind: input, shape index: {}]
  %s3 = inlined_call_operand.vmem [shape: f32[8,48], index: 3, kind: input, shape index: {}]
  %s4 = inlined_call_operand.hbm [shape: f32[2,16], index: 4, kind: output, shape index: {}]
  %s5 = sld [smem:[#allocation0]]
  $region26: #{_lambda_.1} parent=0
    _
  %s7 = ssub.s32 1, %s5
  %s8 = scalar_select 0, %s7, %s5
  $region1: #{_lambda_.1} parent=0
    #allocation2 [shape = 'u8[1024]{0}', space=vmem, size = 0x400, scoped, tag = 'output window, operand 0, single buffered']
    #allocation3 [shape = 's32[1]{0}', space=sflag, size = 0x4, scoped, tag = 'scoped memory for _lambda_.1']
    %9 = vsyncpa [#allocation3], 0
    // Predicated region
    $region2: #{_lambda_.1} parent=1 // pred_check
      _
    $region3: #{_lambda_.1} parent=1 // pred_check_branch
      %11 = sbr.rel (0) target = $region5
    $region4: #{_lambda_.1} parent=1 // pred_region
      _
    $region5: #{_lambda_.1} parent=1 // pred_fallthru
      _
    // Predicated region
    $region6: #{_lambda_.1} parent=1 // pred_check
      _
    $region7: #{_lambda_.1} parent=1 // pred_check_branch
      %13 = sbr.rel (0) target = $region9
    $region8: #{_lambda_.1} parent=1 // pred_region
      _
    $region9: #{_lambda_.1} parent=1 // pred_fallthru
      _
    // Predicated region
    $region10: #{_lambda_.1} parent=1 // pred_check
      _
    $region11: #{_lambda_.1} parent=1 // pred_check_branch
      %15 = sbr.rel (0) target = $region13
    $region12: #{_lambda_.1} parent=1 // pred_region
      _
    $region13: #{_lambda_.1} parent=1 // pred_fallthru
      _
    // Predicated region
    $region14: #{_lambda_.1} parent=1 // pred_check
      _
    $region15: #{_lambda_.1} parent=1 // pred_check_branch
      %17 = sbr.rel (0) target = $region17
    $region16: #{_lambda_.1} parent=1 // pred_region
      _
    $region17: #{_lambda_.1} parent=1 // pred_fallthru
      _
    %v19 = vld [vmem:[%s0] sm:$0xf]
    %v20 = vld [vmem:[%s0 + $0x4] sm:$0xf]
    %v21 = vld [vmem:[%s0 + $0x8] sm:$0xf]
    %v22 = vld [vmem:[%s0 + $0xc] sm:$0xf]
    %v23 = vld [vmem:[%s0 + $0x10] sm:$0xf]
    %v24 = vld [vmem:[%s0 + $0x14] sm:$0xf]
    %v25 = vld [vmem:[%s0 + $0x18] sm:$0xf]
    %v26 = vld [vmem:[%s0 + $0x1c] sm:$0xf]
    %v27 = vld [vmem:[%s0 + $0x20] sm:$0xf]
    %v28 = vld [vmem:[%s0 + $0x24] sm:$0xf]
    %v29 = vld [vmem:[%s0 + $0x28] sm:$0xf]
    %v30 = vld [vmem:[%s0 + $0x2c] sm:$0xf]
    %v31 = vld [vmem:[%s0 + $0x30] sm:$0xf]
    %v32 = vld [vmem:[%s0 + $0x34] sm:$0xf]
    %v33 = vld [vmem:[%s0 + $0x38] sm:$0xf]
    %v34 = vld [vmem:[%s0 + $0x3c] sm:$0xf]
    %v35 = vld [vmem:[%s2] sm:$0xf]
    %v36 = vld [vmem:[%s2 + $0x4] sm:$0x1]
    %v53 = vunpack.c.l.b16 %v19
    %v54 = vunpack.c.l.b16 %v20
    %v55 = vunpack.c.l.b16 %v21
    %v56 = vunpack.c.l.b16 %v22
    %v57 = vunpack.c.l.b16 %v23
    %v58 = vunpack.c.l.b16 %v24
    %v59 = vunpack.c.l.b16 %v25
    %v60 = vunpack.c.l.b16 %v26
    %v61 = vunpack.c.l.b16 %v27
    %v62 = vunpack.c.l.b16 %v28
    %v63 = vunpack.c.l.b16 %v29
    %v64 = vunpack.c.l.b16 %v30
    %v65 = vunpack.c.l.b16 %v31
    %v66 = vunpack.c.l.b16 %v32
    %v67 = vunpack.c.l.b16 %v33
    %v68 = vunpack.c.l.b16 %v34
    %v69 = vpack.c.b16 %v54, %v53
    %v70 = vpack.c.b16 %v56, %v55
    %v71 = vpack.c.b16 %v58, %v57
    %v72 = vpack.c.b16 %v60, %v59
    %v73 = vpack.c.b16 %v62, %v61
    %v74 = vpack.c.b16 %v64, %v63
    %v75 = vpack.c.b16 %v66, %v65
    %v76 = vpack.c.b16 %v68, %v67
    %v79 = vunpack.c.l.b16 %v35
    %v80 = vunpack.c.l.b16 %v36
    %v81 = vpack.c.b16 %v80, %v79
    %vm82 = vcmask 72704
    %v84 = vsel %vm82, %v69, 0
    %v87 = vsel %vm82, %v70, 0
    %v90 = vsel %vm82, %v71, 0
    %v93 = vsel %vm82, %v72, 0
    %v96 = vsel %vm82, %v73, 0
    %v99 = vsel %vm82, %v74, 0
    %v102 = vsel %vm82, %v75, 0
    %v105 = vsel %vm82, %v76, 0
    %vm107 = vcmask 1043456
    %vm108 = vcmask 1044480
    %v109 = vsel %vm107, 4294967295, 65535
    %v110 = vsel %vm108, %v109, 0
    %v112 = vand.u32 %v81, %v110
    %114 = vmatpush.bf16.msra.mxu0 0
    %115 = vmatpush.bf16.msra.mxu0 0
    %116 = vmatpush.bf16.msra.mxu0 0
    %117 = vmatpush.bf16.msra.mxu0 0
    %118 = vmatpush.bf16.msra.mxu0 0
    %119 = vmatpush.bf16.msra.mxu0 0
    %120 = vmatpush.bf16.msra.mxu0 0
    %121 = vmatpush.bf16.msra.mxu0 %v112
    %122 = vmatmul.bf16.gmra.mxu0 %v84
    %v123 = vpop.f32.mrf.mxu0
    %v124 = vadd.f32 0.0, %v123
    %v125 = vpop.f32.mrf.mxu0
    %v126 = vadd.f32 0.0, %v125
    %127 = vmatmul.bf16.gmra.mxu0 %v87
    %v128 = vpop.f32.mrf.mxu0
    %v129 = vadd.f32 0.0, %v128
    %v130 = vpop.f32.mrf.mxu0
    %v131 = vadd.f32 0.0, %v130
    %132 = vmatmul.bf16.gmra.mxu0 %v90
    %v133 = vpop.f32.mrf.mxu0
    %v134 = vadd.f32 0.0, %v133
    %v135 = vpop.f32.mrf.mxu0
    %v136 = vadd.f32 0.0, %v135
    %137 = vmatmul.bf16.gmra.mxu0 %v93
    %v138 = vpop.f32.mrf.mxu0
    %v139 = vadd.f32 0.0, %v138
    %v140 = vpop.f32.mrf.mxu0
    %v141 = vadd.f32 0.0, %v140
    %142 = vmatmul.bf16.gmra.mxu0 %v96
    %v143 = vpop.f32.mrf.mxu0
    %v144 = vadd.f32 0.0, %v143
    %v145 = vpop.f32.mrf.mxu0
    %v146 = vadd.f32 0.0, %v145
    %147 = vmatmul.bf16.gmra.mxu0 %v99
    %v148 = vpop.f32.mrf.mxu0
    %v149 = vadd.f32 0.0, %v148
    %v150 = vpop.f32.mrf.mxu0
    %v151 = vadd.f32 0.0, %v150
    %152 = vmatmul.bf16.gmra.mxu0 %v102
    %v153 = vpop.f32.mrf.mxu0
    %v154 = vadd.f32 0.0, %v153
    %v155 = vpop.f32.mrf.mxu0
    %v156 = vadd.f32 0.0, %v155
    %157 = vmatmul.bf16.gmra.mxu0 %v105
    %v158 = vpop.f32.mrf.mxu0
    %v159 = vadd.f32 0.0, %v158
    %v160 = vpop.f32.mrf.mxu0
    %v161 = vadd.f32 0.0, %v160
    %162 = vdwg.mxu0
    %v163 = vld [vmem:[%s3] sm:$0x1]
    %v164 = vld [vmem:[%s3 + $0x1] sm:$0x1]
    %vm165 = vcmask 31744
    %v166 = vsel %vm165, %v124, 0.0
    %v167 = vsel %vm165, %v126, 0.0
    %v168 = vadd.f32 %v166, %v167
    %v169 = vsel %vm165, %v129, 0.0
    %v170 = vadd.f32 %v168, %v169
    %v171 = vsel %vm165, %v131, 0.0
    %v172 = vadd.f32 %v170, %v171
    %v173 = vsel %vm165, %v134, 0.0
    %v174 = vadd.f32 %v172, %v173
    %v175 = vsel %vm165, %v136, 0.0
    %v176 = vadd.f32 %v174, %v175
    %v177 = vsel %vm165, %v139, 0.0
    %v178 = vadd.f32 %v176, %v177
    %v179 = vsel %vm165, %v141, 0.0
    %v180 = vadd.f32 %v178, %v179
    %v181 = vsel %vm165, %v144, 0.0
    %v182 = vadd.f32 %v180, %v181
    %v183 = vsel %vm165, %v146, 0.0
    %v184 = vadd.f32 %v182, %v183
    %v185 = vsel %vm165, %v149, 0.0
    %v186 = vadd.f32 %v184, %v185
    %v187 = vsel %vm165, %v151, 0.0
    %v188 = vadd.f32 %v186, %v187
    %v189 = vsel %vm165, %v154, 0.0
    %v190 = vadd.f32 %v188, %v189
    %v191 = vsel %vm165, %v156, 0.0
    %v192 = vadd.f32 %v190, %v191
    %v193 = vsel %vm165, %v159, 0.0
    %v194 = vadd.f32 %v192, %v193
    %v195 = vsel %vm165, %v161, 0.0
    %v196 = vadd.f32 %v194, %v195
    %v197 = vrot.slane %v196, 4
    %v198 = vadd.f32 %v196, %v197
    %v199 = vrot.slane %v198, 2
    %v200 = vadd.f32 %v198, %v199
    %v201 = vrot.slane %v200, 1
    %v202 = vadd.f32 %v200, %v201
    %v203 = vmul.f32 %v202, 0.0078125
    %v204 = vsub.f32 %v124, %v203
    %v205 = vsub.f32 %v126, %v203
    %v206 = vsub.f32 %v129, %v203
    %v207 = vsub.f32 %v131, %v203
    %v208 = vsub.f32 %v134, %v203
    %v209 = vsub.f32 %v136, %v203
    %v210 = vsub.f32 %v139, %v203
    %v211 = vsub.f32 %v141, %v203
    %v212 = vsub.f32 %v144, %v203
    %v213 = vsub.f32 %v146, %v203
    %v214 = vsub.f32 %v149, %v203
    %v215 = vsub.f32 %v151, %v203
    %v216 = vsub.f32 %v154, %v203
    %v217 = vsub.f32 %v156, %v203
    %v218 = vsub.f32 %v159, %v203
    %v219 = vsub.f32 %v161, %v203
    %v220 = vmul.f32 %v204, %v204
    %v221 = vmul.f32 %v205, %v205
    %v222 = vmul.f32 %v206, %v206
    %v223 = vmul.f32 %v207, %v207
    %v224 = vmul.f32 %v208, %v208
    %v225 = vmul.f32 %v209, %v209
    %v226 = vmul.f32 %v210, %v210
    %v227 = vmul.f32 %v211, %v211
    %v228 = vmul.f32 %v212, %v212
    %v229 = vmul.f32 %v213, %v213
    %v230 = vmul.f32 %v214, %v214
    %v231 = vmul.f32 %v215, %v215
    %v232 = vmul.f32 %v216, %v216
    %v233 = vmul.f32 %v217, %v217
    %v234 = vmul.f32 %v218, %v218
    %v235 = vmul.f32 %v219, %v219
    %v236 = vsel %vm165, %v220, 0.0
    %v237 = vsel %vm165, %v221, 0.0
    %v238 = vadd.f32 %v236, %v237
    %v239 = vsel %vm165, %v222, 0.0
    %v240 = vadd.f32 %v238, %v239
    %v241 = vsel %vm165, %v223, 0.0
    %v242 = vadd.f32 %v240, %v241
    %v243 = vsel %vm165, %v224, 0.0
    %v244 = vadd.f32 %v242, %v243
    %v245 = vsel %vm165, %v225, 0.0
    %v246 = vadd.f32 %v244, %v245
    %v247 = vsel %vm165, %v226, 0.0
    %v248 = vadd.f32 %v246, %v247
    %v249 = vsel %vm165, %v227, 0.0
    %v250 = vadd.f32 %v248, %v249
    %v251 = vsel %vm165, %v228, 0.0
    %v252 = vadd.f32 %v250, %v251
    %v253 = vsel %vm165, %v229, 0.0
    %v254 = vadd.f32 %v252, %v253
    %v255 = vsel %vm165, %v230, 0.0
    %v256 = vadd.f32 %v254, %v255
    %v257 = vsel %vm165, %v231, 0.0
    %v258 = vadd.f32 %v256, %v257
    %v259 = vsel %vm165, %v232, 0.0
    %v260 = vadd.f32 %v258, %v259
    %v261 = vsel %vm165, %v233, 0.0
    %v262 = vadd.f32 %v260, %v261
    %v263 = vsel %vm165, %v234, 0.0
    %v264 = vadd.f32 %v262, %v263
    %v265 = vsel %vm165, %v235, 0.0
    %v266 = vadd.f32 %v264, %v265
    %v267 = vrot.slane %v266, 4
    %v268 = vadd.f32 %v266, %v267
    %v269 = vrot.slane %v268, 2
    %v270 = vadd.f32 %v268, %v269
    %v271 = vrot.slane %v270, 1
    %v272 = vadd.f32 %v270, %v271
    %v273 = vmul.f32 %v272, 0.0078125
    %v274 = vadd.f32 %v273, 1e-05
    %v275 = vrsqrt.pop %v274
    %v276 = vmul.f32 %v275, %v274
    %v277 = vmul.f32 %v276, %v275
    %v278 = vmul.f32 0.5, %v277
    %v279 = vsub.f32 1.5, %v278
    %v280 = vmul.f32 %v275, %v279
    %vm281 = vweird.f32 %v274
    %vm282 = vweird.f32 %v275
    %vm283 = vmor %vm281, %vm282
    %v284 = vsel %vm283, %v275, %v280
    %v285 = vmul.f32 %v204, %v284
    %v286 = vmul.f32 %v205, %v284
    %v287 = vmul.f32 %v206, %v284
    %v288 = vmul.f32 %v207, %v284
    %v289 = vmul.f32 %v208, %v284
    %v290 = vmul.f32 %v209, %v284
    %v291 = vmul.f32 %v210, %v284
    %v292 = vmul.f32 %v211, %v284
    %v293 = vmul.f32 %v212, %v284
    %v294 = vmul.f32 %v213, %v284
    %v295 = vmul.f32 %v214, %v284
    %v296 = vmul.f32 %v215, %v284
    %v297 = vmul.f32 %v216, %v284
    %v298 = vmul.f32 %v217, %v284
    %v299 = vmul.f32 %v218, %v284
    %v300 = vmul.f32 %v219, %v284
    %v301 = vperm.slane %v163, 0
    %v302 = vmul.f32 %v301, %v285
    %v303 = vmul.f32 %v301, %v286
    %v304 = vmul.f32 %v301, %v287
    %v305 = vmul.f32 %v301, %v288
    %v306 = vmul.f32 %v301, %v289
    %v307 = vmul.f32 %v301, %v290
    %v308 = vmul.f32 %v301, %v291
    %v309 = vmul.f32 %v301, %v292
    %v310 = vmul.f32 %v301, %v293
    %v311 = vmul.f32 %v301, %v294
    %v312 = vmul.f32 %v301, %v295
    %v313 = vmul.f32 %v301, %v296
    %v314 = vmul.f32 %v301, %v297
    %v315 = vmul.f32 %v301, %v298
    %v316 = vmul.f32 %v301, %v299
    %v317 = vmul.f32 %v301, %v300
    %v318 = vperm.slane %v164, 0
    %v319 = vadd.f32 %v302, %v318
    %v320 = vadd.f32 %v303, %v318
    %v321 = vadd.f32 %v304, %v318
    %v322 = vadd.f32 %v305, %v318
    %v323 = vadd.f32 %v306, %v318
    %v324 = vadd.f32 %v307, %v318
    %v325 = vadd.f32 %v308, %v318
    %v326 = vadd.f32 %v309, %v318
    %v327 = vadd.f32 %v310, %v318
    %v328 = vadd.f32 %v311, %v318
    %v329 = vadd.f32 %v312, %v318
    %v330 = vadd.f32 %v313, %v318
    %v331 = vadd.f32 %v314, %v318
    %v332 = vadd.f32 %v315, %v318
    %v333 = vadd.f32 %v316, %v318
    %v334 = vadd.f32 %v317, %v318
    %v335 = vmax.f32 %v319, 0.0
    %v336 = vmax.f32 %v320, 0.0
    %v337 = vmax.f32 %v321, 0.0
    %v338 = vmax.f32 %v322, 0.0
    %v339 = vmax.f32 %v323, 0.0
    %v340 = vmax.f32 %v324, 0.0
    %v341 = vmax.f32 %v325, 0.0
    %v342 = vmax.f32 %v326, 0.0
    %v343 = vmax.f32 %v327, 0.0
    %v344 = vmax.f32 %v328, 0.0
    %v345 = vmax.f32 %v329, 0.0
    %v346 = vmax.f32 %v330, 0.0
    %v347 = vmax.f32 %v331, 0.0
    %v348 = vmax.f32 %v332, 0.0
    %v349 = vmax.f32 %v333, 0.0
    %v350 = vmax.f32 %v334, 0.0
    %v351 = vld [vmem:[%s1] sm:$0xf]
    %v352 = vld [vmem:[%s1 + $0x4] sm:$0xf]
    %v353 = vld [vmem:[%s1 + $0x8] sm:$0xf]
    %v354 = vld [vmem:[%s1 + $0xc] sm:$0xf]
    %v355 = vld [vmem:[%s1 + $0x10] sm:$0xf]
    %v356 = vld [vmem:[%s1 + $0x14] sm:$0xf]
    %v357 = vld [vmem:[%s1 + $0x18] sm:$0xf]
    %v358 = vld [vmem:[%s1 + $0x1c] sm:$0xf]
    %v359 = vld [vmem:[%s1 + $0x20] sm:$0xf]
    %v360 = vld [vmem:[%s1 + $0x24] sm:$0xf]
    %v361 = vld [vmem:[%s1 + $0x28] sm:$0xf]
    %v362 = vld [vmem:[%s1 + $0x2c] sm:$0xf]
    %v363 = vld [vmem:[%s1 + $0x30] sm:$0xf]
    %v364 = vld [vmem:[%s1 + $0x34] sm:$0xf]
    %v365 = vld [vmem:[%s1 + $0x38] sm:$0xf]
    %v366 = vld [vmem:[%s1 + $0x3c] sm:$0xf]
    %v367 = vld [vmem:[%s1 + $0x40] sm:$0xf]
    %v368 = vld [vmem:[%s1 + $0x44] sm:$0xf]
    %v369 = vld [vmem:[%s1 + $0x48] sm:$0xf]
    %v370 = vld [vmem:[%s1 + $0x4c] sm:$0xf]
    %v371 = vld [vmem:[%s1 + $0x50] sm:$0xf]
    %v372 = vld [vmem:[%s1 + $0x54] sm:$0xf]
    %v373 = vld [vmem:[%s1 + $0x58] sm:$0xf]
    %v374 = vld [vmem:[%s1 + $0x5c] sm:$0xf]
    %v375 = vld [vmem:[%s1 + $0x60] sm:$0xf]
    %v376 = vld [vmem:[%s1 + $0x64] sm:$0xf]
    %v377 = vld [vmem:[%s1 + $0x68] sm:$0xf]
    %v378 = vld [vmem:[%s1 + $0x6c] sm:$0xf]
    %v379 = vld [vmem:[%s1 + $0x70] sm:$0xf]
    %v380 = vld [vmem:[%s1 + $0x74] sm:$0xf]
    %v381 = vld [vmem:[%s1 + $0x78] sm:$0xf]
    %v382 = vld [vmem:[%s1 + $0x7c] sm:$0xf]
    %v383 = vld [vmem:[%s1 + $0x80] sm:$0xf]
    %v384 = vld [vmem:[%s1 + $0x84] sm:$0xf]
    %v385 = vld [vmem:[%s1 + $0x88] sm:$0xf]
    %v386 = vld [vmem:[%s1 + $0x8c] sm:$0xf]
    %v387 = vpack.c.bf16 %v336, %v335
    %v388 = vpack.c.bf16 %v338, %v337
    %v389 = vpack.c.bf16 %v340, %v339
    %v390 = vpack.c.bf16 %v342, %v341
    %v391 = vpack.c.bf16 %v344, %v343
    %v392 = vpack.c.bf16 %v346, %v345
    %v393 = vpack.c.bf16 %v348, %v347
    %v394 = vpack.c.bf16 %v350, %v349
    %v431 = vunpack.c.l.b16 %v351
    %v432 = vunpack.c.l.b16 %v352
    %v433 = vunpack.c.l.b16 %v353
    %v434 = vunpack.c.l.b16 %v354
    %v435 = vunpack.c.l.b16 %v355
    %v436 = vunpack.c.l.b16 %v356
    %v437 = vunpack.c.l.b16 %v357
    %v438 = vunpack.c.l.b16 %v358
    %v439 = vunpack.c.l.b16 %v359
    %v440 = vunpack.c.l.b16 %v360
    %v441 = vunpack.c.l.b16 %v361
    %v442 = vunpack.c.l.b16 %v362
    %v443 = vunpack.c.l.b16 %v363
    %v444 = vunpack.c.l.b16 %v364
    %v445 = vunpack.c.l.b16 %v365
    %v446 = vunpack.c.l.b16 %v366
    %v447 = vunpack.c.l.b16 %v367
    %v448 = vunpack.c.l.b16 %v368
    %v449 = vunpack.c.l.b16 %v369
    %v450 = vunpack.c.l.b16 %v370
    %v451 = vunpack.c.l.b16 %v371
    %v452 = vunpack.c.l.b16 %v372
    %v453 = vunpack.c.l.b16 %v373
    %v454 = vunpack.c.l.b16 %v374
    %v455 = vunpack.c.l.b16 %v375
    %v456 = vunpack.c.l.b16 %v376
    %v457 = vunpack.c.l.b16 %v377
    %v458 = vunpack.c.l.b16 %v378
    %v459 = vunpack.c.l.b16 %v379
    %v460 = vunpack.c.l.b16 %v380
    %v461 = vunpack.c.l.b16 %v381
    %v462 = vunpack.c.l.b16 %v382
    %v463 = vunpack.c.l.b16 %v383
    %v464 = vunpack.c.l.b16 %v384
    %v465 = vunpack.c.l.b16 %v385
    %v466 = vunpack.c.l.b16 %v386
    %v467 = vpack.c.b16 %v432, %v431
    %v468 = vpack.c.b16 %v434, %v433
    %v469 = vpack.c.b16 %v436, %v435
    %v470 = vpack.c.b16 %v438, %v437
    %v471 = vpack.c.b16 %v440, %v439
    %v472 = vpack.c.b16 %v442, %v441
    %v473 = vpack.c.b16 %v444, %v443
    %v474 = vpack.c.b16 %v446, %v445
    %v475 = vpack.c.b16 %v448, %v447
    %v476 = vpack.c.b16 %v450, %v449
    %v477 = vpack.c.b16 %v452, %v451
    %v478 = vpack.c.b16 %v454, %v453
    %v479 = vpack.c.b16 %v456, %v455
    %v480 = vpack.c.b16 %v458, %v457
    %v481 = vpack.c.b16 %v460, %v459
    %v482 = vpack.c.b16 %v462, %v461
    %v483 = vpack.c.b16 %v464, %v463
    %v484 = vpack.c.b16 %v466, %v465
    %503 = vmatpush.bf16.msra.mxu0 %v394
    %504 = vmatpush.bf16.msra.mxu0 %v393
    %505 = vmatpush.bf16.msra.mxu0 %v392
    %506 = vmatpush.bf16.msra.mxu0 %v391
    %507 = vmatpush.bf16.msra.mxu0 %v390
    %508 = vmatpush.bf16.msra.mxu0 %v389
    %509 = vmatpush.bf16.msra.mxu0 %v388
    %510 = vmatpush.bf16.msra.mxu0 %v387
    %511 = vmatmul.bf16.gmra.mxu0 %v467
    %v512 = vpop.f32.mrf.mxu0
    %v513 = vadd.f32 0.0, %v512
    %v514 = vpop.f32.mrf.mxu0
    %v515 = vadd.f32 0.0, %v514
    %516 = vmatmul.bf16.gmra.mxu0 %v468
    %v517 = vpop.f32.mrf.mxu0
    %v518 = vadd.f32 0.0, %v517
    %v519 = vpop.f32.mrf.mxu0
    %v520 = vadd.f32 0.0, %v519
    %521 = vmatmul.bf16.gmra.mxu0 %v469
    %v522 = vpop.f32.mrf.mxu0
    %v523 = vadd.f32 0.0, %v522
    %v524 = vpop.f32.mrf.mxu0
    %v525 = vadd.f32 0.0, %v524
    %526 = vmatmul.bf16.gmra.mxu0 %v470
    %v527 = vpop.f32.mrf.mxu0
    %v528 = vadd.f32 0.0, %v527
    %v529 = vpop.f32.mrf.mxu0
    %v530 = vadd.f32 0.0, %v529
    %531 = vmatmul.bf16.gmra.mxu0 %v471
    %v532 = vpop.f32.mrf.mxu0
    %v533 = vadd.f32 0.0, %v532
    %v534 = vpop.f32.mrf.mxu0
    %v535 = vadd.f32 0.0, %v534
    %536 = vmatmul.bf16.gmra.mxu0 %v472
    %v537 = vpop.f32.mrf.mxu0
    %v538 = vadd.f32 0.0, %v537
    %v539 = vpop.f32.mrf.mxu0
    %v540 = vadd.f32 0.0, %v539
    %541 = vmatmul.bf16.gmra.mxu0 %v473
    %v542 = vpop.f32.mrf.mxu0
    %v543 = vadd.f32 0.0, %v542
    %v544 = vpop.f32.mrf.mxu0
    %v545 = vadd.f32 0.0, %v544
    %546 = vmatmul.bf16.gmra.mxu0 %v474
    %v547 = vpop.f32.mrf.mxu0
    %v548 = vadd.f32 0.0, %v547
    %v549 = vpop.f32.mrf.mxu0
    %v550 = vadd.f32 0.0, %v549
    %551 = vmatmul.bf16.gmra.mxu0 %v475
    %v552 = vpop.f32.mrf.mxu0
    %v553 = vadd.f32 0.0, %v552
    %v554 = vpop.f32.mrf.mxu0
    %v555 = vadd.f32 0.0, %v554
    %556 = vmatmul.bf16.gmra.mxu0 %v476
    %v557 = vpop.f32.mrf.mxu0
    %v558 = vadd.f32 0.0, %v557
    %v559 = vpop.f32.mrf.mxu0
    %v560 = vadd.f32 0.0, %v559
    %561 = vmatmul.bf16.gmra.mxu0 %v477
    %v562 = vpop.f32.mrf.mxu0
    %v563 = vadd.f32 0.0, %v562
    %v564 = vpop.f32.mrf.mxu0
    %v565 = vadd.f32 0.0, %v564
    %566 = vmatmul.bf16.gmra.mxu0 %v478
    %v567 = vpop.f32.mrf.mxu0
    %v568 = vadd.f32 0.0, %v567
    %v569 = vpop.f32.mrf.mxu0
    %v570 = vadd.f32 0.0, %v569
    %571 = vmatmul.bf16.gmra.mxu0 %v479
    %v572 = vpop.f32.mrf.mxu0
    %v573 = vadd.f32 0.0, %v572
    %v574 = vpop.f32.mrf.mxu0
    %v575 = vadd.f32 0.0, %v574
    %576 = vmatmul.bf16.gmra.mxu0 %v480
    %v577 = vpop.f32.mrf.mxu0
    %v578 = vadd.f32 0.0, %v577
    %v579 = vpop.f32.mrf.mxu0
    %v580 = vadd.f32 0.0, %v579
    %581 = vmatmul.bf16.gmra.mxu0 %v481
    %v582 = vpop.f32.mrf.mxu0
    %v583 = vadd.f32 0.0, %v582
    %v584 = vpop.f32.mrf.mxu0
    %v585 = vadd.f32 0.0, %v584
    %586 = vmatmul.bf16.gmra.mxu0 %v482
    %v587 = vpop.f32.mrf.mxu0
    %v588 = vadd.f32 0.0, %v587
    %v589 = vpop.f32.mrf.mxu0
    %v590 = vadd.f32 0.0, %v589
    %591 = vmatmul.bf16.gmra.mxu0 %v483
    %v592 = vpop.f32.mrf.mxu0
    %v593 = vadd.f32 0.0, %v592
    %v594 = vpop.f32.mrf.mxu0
    %v595 = vadd.f32 0.0, %v594
    %596 = vmatmul.bf16.gmra.mxu0 %v484
    %v597 = vpop.f32.mrf.mxu0
    %v598 = vadd.f32 0.0, %v597
    %v599 = vpop.f32.mrf.mxu0
    %v600 = vadd.f32 0.0, %v599
    %601 = vdwg.mxu0
    %606 = vrot.lane.b32.xlu0 %v523, 4
    %v607 = vpop.permute.xlu0 %606
    %608 = vrot.lane.b32.xlu0 %v525, 4
    %v609 = vpop.permute.xlu0 %608
    %610 = vrot.lane.b32.xlu0 %v528, 4
    %v611 = vpop.permute.xlu0 %610
    %612 = vrot.lane.b32.xlu0 %v530, 4
    %v613 = vpop.permute.xlu0 %612
    %622 = vrot.lane.b32.xlu0 %v533, 8
    %v623 = vpop.permute.xlu0 %622
    %624 = vrot.lane.b32.xlu0 %v535, 8
    %v625 = vpop.permute.xlu0 %624
    %626 = vrot.lane.b32.xlu0 %v538, 8
    %v627 = vpop.permute.xlu0 %626
    %628 = vrot.lane.b32.xlu0 %v540, 8
    %v629 = vpop.permute.xlu0 %628
    %638 = vrot.lane.b32.xlu0 %v543, 12
    %v639 = vpop.permute.xlu0 %638
    %640 = vrot.lane.b32.xlu0 %v545, 12
    %v641 = vpop.permute.xlu0 %640
    %642 = vrot.lane.b32.xlu0 %v548, 12
    %v643 = vpop.permute.xlu0 %642
    %644 = vrot.lane.b32.xlu0 %v550, 12
    %v645 = vpop.permute.xlu0 %644
    %654 = vrot.lane.b32.xlu0 %v553, 16
    %v655 = vpop.permute.xlu0 %654
    %656 = vrot.lane.b32.xlu0 %v555, 16
    %v657 = vpop.permute.xlu0 %656
    %658 = vrot.lane.b32.xlu0 %v558, 16
    %v659 = vpop.permute.xlu0 %658
    %660 = vrot.lane.b32.xlu0 %v560, 16
    %v661 = vpop.permute.xlu0 %660
    %670 = vrot.lane.b32.xlu0 %v563, 20
    %v671 = vpop.permute.xlu0 %670
    %672 = vrot.lane.b32.xlu0 %v565, 20
    %v673 = vpop.permute.xlu0 %672
    %674 = vrot.lane.b32.xlu0 %v568, 20
    %v675 = vpop.permute.xlu0 %674
    %676 = vrot.lane.b32.xlu0 %v570, 20
    %v677 = vpop.permute.xlu0 %676
    %686 = vrot.lane.b32.xlu0 %v573, 24
    %v687 = vpop.permute.xlu0 %686
    %688 = vrot.lane.b32.xlu0 %v575, 24
    %v689 = vpop.permute.xlu0 %688
    %690 = vrot.lane.b32.xlu0 %v578, 24
    %v691 = vpop.permute.xlu0 %690
    %692 = vrot.lane.b32.xlu0 %v580, 24
    %v693 = vpop.permute.xlu0 %692
    %702 = vrot.lane.b32.xlu0 %v583, 28
    %v703 = vpop.permute.xlu0 %702
    %704 = vrot.lane.b32.xlu0 %v585, 28
    %v705 = vpop.permute.xlu0 %704
    %706 = vrot.lane.b32.xlu0 %v588, 28
    %v707 = vpop.permute.xlu0 %706
    %708 = vrot.lane.b32.xlu0 %v590, 28
    %v709 = vpop.permute.xlu0 %708
    %718 = vrot.lane.b32.xlu0 %v593, 32
    %v719 = vpop.permute.xlu0 %718
    %720 = vrot.lane.b32.xlu0 %v595, 32
    %v721 = vpop.permute.xlu0 %720
    %722 = vrot.lane.b32.xlu0 %v598, 32
    %v723 = vpop.permute.xlu0 %722
    %724 = vrot.lane.b32.xlu0 %v600, 32
    %v725 = vpop.permute.xlu0 %724
    %v730 = vsel %vm165, %v513, %v607
    %v731 = vsel %vm165, %v515, %v609
    %v732 = vsel %vm165, %v518, %v611
    %v733 = vsel %vm165, %v520, %v613
    %vm734 = vcmask 64512
    %v735 = vsel %vm734, %v730, %v623
    %v736 = vsel %vm734, %v731, %v625
    %v737 = vsel %vm734, %v732, %v627
    %v738 = vsel %vm734, %v733, %v629
    %vm739 = vcmask 97280
    %v740 = vsel %vm739, %v735, %v639
    %v741 = vsel %vm739, %v736, %v641
    %v742 = vsel %vm739, %v737, %v643
    %v743 = vsel %vm739, %v738, %v645
    %vm744 = vcmask 130048
    %v745 = vsel %vm744, %v740, %v655
    %v746 = vsel %vm744, %v741, %v657
    %v747 = vsel %vm744, %v742, %v659
    %v748 = vsel %vm744, %v743, %v661
    %vm749 = vcmask 162816
    %v750 = vsel %vm749, %v745, %v671
    %v751 = vsel %vm749, %v746, %v673
    %v752 = vsel %vm749, %v747, %v675
    %v753 = vsel %vm749, %v748, %v677
    %vm754 = vcmask 195584
    %v755 = vsel %vm754, %v750, %v687
    %v756 = vsel %vm754, %v751, %v689
    %v757 = vsel %vm754, %v752, %v691
    %v758 = vsel %vm754, %v753, %v693
    %vm759 = vcmask 228352
    %v760 = vsel %vm759, %v755, %v703
    %v761 = vsel %vm759, %v756, %v705
    %v762 = vsel %vm759, %v757, %v707
    %v763 = vsel %vm759, %v758, %v709
    %vm764 = vcmask 261120
    %v765 = vsel %vm764, %v760, %v719
    %v766 = vsel %vm764, %v761, %v721
    %v767 = vsel %vm764, %v762, %v723
    %v768 = vsel %vm764, %v763, %v725
    %v769 = vld [vmem:[%s2 + $0x8] sm:$0xf]
    %v770 = vld [vmem:[%s2 + $0xc] sm:$0xf]
    %v771 = vld [vmem:[%s2 + $0x10] sm:$0xf]
    %v772 = vld [vmem:[%s2 + $0x14] sm:$0xf]
    %v773 = vld [vmem:[%s2 + $0x18] sm:$0x3]
    %v774 = vpack.c.bf16 %v766, %v765
    %v775 = vpack.c.bf16 %v768, %v767
    %v781 = vunpack.c.l.b16 %v769
    %v782 = vunpack.c.l.b16 %v770
    %v783 = vunpack.c.l.b16 %v771
    %v784 = vunpack.c.l.b16 %v772
    %v785 = vunpack.c.l.b16 %v773
    %v786 = vpack.c.b16 %v782, %v781
    %v787 = vpack.c.b16 %v784, %v783
    %v788 = vpack.c.b16 %v785, %v785
    %vm791 = vcmask 293888
    %v793 = vsel %vm791, %v774, 0
    %v796 = vsel %vm791, %v775, 0
    %vm798 = vcmask 1041408
    %v800 = vsel %vm798, %v788, 0
    %802 = vmatpush.bf16.msra.mxu0 0
    %803 = vmatpush.bf16.msra.mxu0 0
    %804 = vmatpush.bf16.msra.mxu0 0
    %805 = vmatpush.bf16.msra.mxu0 0
    %806 = vmatpush.bf16.msra.mxu0 0
    %807 = vmatpush.bf16.msra.mxu0 %v800
    %808 = vmatpush.bf16.msra.mxu0 %v787
    %809 = vmatpush.bf16.msra.mxu0 %v786
    %810 = vmatmul.bf16.gmra.mxu0 %v793
    %v811 = vpop.f32.mrf.mxu0
    %v812 = vadd.f32 0.0, %v811
    %v813 = vpop.f32.mrf.mxu0
    %v814 = vadd.f32 0.0, %v813
    %815 = vmatmul.bf16.gmra.mxu0 %v796
    %v816 = vpop.f32.mrf.mxu0
    %v817 = vadd.f32 0.0, %v816
    %v818 = vpop.f32.mrf.mxu0
    %v819 = vadd.f32 0.0, %v818
    %820 = vdwg.mxu0
    %v821 = vld [vmem:[%s3 + $0x2] sm:$0x1]
    %v822 = vld [vmem:[%s3 + $0x3] sm:$0x1]
    %v823 = vsel %vm734, %v812, 0.0
    %v824 = vsel %vm734, %v814, 0.0
    %v825 = vadd.f32 %v823, %v824
    %v826 = vsel %vm734, %v817, 0.0
    %v827 = vadd.f32 %v825, %v826
    %v828 = vsel %vm734, %v819, 0.0
    %v829 = vadd.f32 %v827, %v828
    %v830 = vrot.slane %v829, 4
    %v831 = vadd.f32 %v829, %v830
    %v832 = vrot.slane %v831, 2
    %v833 = vadd.f32 %v831, %v832
    %v834 = vrot.slane %v833, 1
    %v835 = vadd.f32 %v833, %v834
    %v836 = vmul.f32 %v835, 0.03125
    %v837 = vsub.f32 %v812, %v836
    %v838 = vsub.f32 %v814, %v836
    %v839 = vsub.f32 %v817, %v836
    %v840 = vsub.f32 %v819, %v836
    %v841 = vmul.f32 %v837, %v837
    %v842 = vmul.f32 %v838, %v838
    %v843 = vmul.f32 %v839, %v839
    %v844 = vmul.f32 %v840, %v840
    %v845 = vsel %vm734, %v841, 0.0
    %v846 = vsel %vm734, %v842, 0.0
    %v847 = vadd.f32 %v845, %v846
    %v848 = vsel %vm734, %v843, 0.0
    %v849 = vadd.f32 %v847, %v848
    %v850 = vsel %vm734, %v844, 0.0
    %v851 = vadd.f32 %v849, %v850
    %v852 = vrot.slane %v851, 4
    %v853 = vadd.f32 %v851, %v852
    %v854 = vrot.slane %v853, 2
    %v855 = vadd.f32 %v853, %v854
    %v856 = vrot.slane %v855, 1
    %v857 = vadd.f32 %v855, %v856
    %v858 = vmul.f32 %v857, 0.03125
    %v859 = vadd.f32 %v858, 1e-05
    %v860 = vrsqrt.pop %v859
    %v861 = vmul.f32 %v860, %v859
    %v862 = vmul.f32 %v861, %v860
    %v863 = vmul.f32 0.5, %v862
    %v864 = vsub.f32 1.5, %v863
    %v865 = vmul.f32 %v860, %v864
    %vm866 = vweird.f32 %v859
    %vm867 = vweird.f32 %v860
    %vm868 = vmor %vm866, %vm867
    %v869 = vsel %vm868, %v860, %v865
    %v870 = vmul.f32 %v837, %v869
    %v871 = vmul.f32 %v838, %v869
    %v872 = vmul.f32 %v839, %v869
    %v873 = vmul.f32 %v840, %v869
    %v874 = vperm.slane %v821, 0
    %v875 = vmul.f32 %v874, %v870
    %v876 = vmul.f32 %v874, %v871
    %v877 = vmul.f32 %v874, %v872
    %v878 = vmul.f32 %v874, %v873
    %v879 = vperm.slane %v822, 0
    %v880 = vadd.f32 %v875, %v879
    %v881 = vadd.f32 %v876, %v879
    %v882 = vadd.f32 %v877, %v879
    %v883 = vadd.f32 %v878, %v879
    %v884 = vmax.f32 %v880, 0.0
    %v885 = vmax.f32 %v881, 0.0
    %v886 = vmax.f32 %v882, 0.0
    %v887 = vmax.f32 %v883, 0.0
    %v888 = vld [vmem:[%s1 + $0x90] sm:$0xf]
    %v889 = vld [vmem:[%s1 + $0x94] sm:$0xf]
    %v890 = vld [vmem:[%s1 + $0x98] sm:$0xf]
    %v891 = vld [vmem:[%s1 + $0x9c] sm:$0xf]
    %v892 = vld [vmem:[%s1 + $0xa0] sm:$0xf]
    %v893 = vld [vmem:[%s1 + $0xa4] sm:$0xf]
    %v894 = vld [vmem:[%s1 + $0xa8] sm:$0xf]
    %v895 = vld [vmem:[%s1 + $0xac] sm:$0xf]
    %v896 = vld [vmem:[%s1 + $0xb0] sm:$0xf]
    %v897 = vpack.c.bf16 %v885, %v884
    %v898 = vpack.c.bf16 %v887, %v886
    %v908 = vunpack.c.l.b16 %v888
    %v909 = vunpack.c.l.b16 %v889
    %v910 = vunpack.c.l.b16 %v890
    %v911 = vunpack.c.l.b16 %v891
    %v912 = vunpack.c.l.b16 %v892
    %v913 = vunpack.c.l.b16 %v893
    %v914 = vunpack.c.l.b16 %v894
    %v915 = vunpack.c.l.b16 %v895
    %v916 = vunpack.c.l.b16 %v896
    %v917 = vpack.c.b16 %v909, %v908
    %v918 = vpack.c.b16 %v911, %v910
    %v919 = vpack.c.b16 %v913, %v912
    %v920 = vpack.c.b16 %v915, %v914
    %v921 = vpack.c.b16 %v916, %v916
    %v923 = vsel %vm764, %v917, 0
    %v926 = vsel %vm764, %v918, 0
    %v929 = vsel %vm764, %v919, 0
    %v932 = vsel %vm764, %v920, 0
    %v935 = vsel %vm764, %v921, 0
    %937 = vmatpush.bf16.msra.mxu0 0
    %938 = vmatpush.bf16.msra.mxu0 0
    %939 = vmatpush.bf16.msra.mxu0 0
    %940 = vmatpush.bf16.msra.mxu0 0
    %941 = vmatpush.bf16.msra.mxu0 0
    %942 = vmatpush.bf16.msra.mxu0 0
    %943 = vmatpush.bf16.msra.mxu0 %v898
    %944 = vmatpush.bf16.msra.mxu0 %v897
    %945 = vmatmul.bf16.gmra.mxu0 %v923
    %v946 = vpop.f32.mrf.mxu0
    %v947 = vadd.f32 0.0, %v946
    %v948 = vpop.f32.mrf.mxu0
    %v949 = vadd.f32 0.0, %v948
    %950 = vmatmul.bf16.gmra.mxu0 %v926
    %v951 = vpop.f32.mrf.mxu0
    %v952 = vadd.f32 0.0, %v951
    %v953 = vpop.f32.mrf.mxu0
    %v954 = vadd.f32 0.0, %v953
    %955 = vmatmul.bf16.gmra.mxu0 %v929
    %v956 = vpop.f32.mrf.mxu0
    %v957 = vadd.f32 0.0, %v956
    %v958 = vpop.f32.mrf.mxu0
    %v959 = vadd.f32 0.0, %v958
    %960 = vmatmul.bf16.gmra.mxu0 %v932
    %v961 = vpop.f32.mrf.mxu0
    %v962 = vadd.f32 0.0, %v961
    %v963 = vpop.f32.mrf.mxu0
    %v964 = vadd.f32 0.0, %v963
    %965 = vmatmul.bf16.gmra.mxu0 %v935
    %v966 = vpop.f32.mrf.mxu0
    %v967 = vadd.f32 0.0, %v966
    %v968 = vpop.f32.mrf.mxu0
    %969 = vdwg.mxu0
    %971 = vrot.lane.b32.xlu0 %v949, 8
    %v972 = vpop.permute.xlu0 %971
    %975 = vrot.lane.b32.xlu0 %v952, 16
    %v976 = vpop.permute.xlu0 %975
    %979 = vrot.lane.b32.xlu0 %v954, 24
    %v980 = vpop.permute.xlu0 %979
    %983 = vrot.lane.b32.xlu0 %v957, 32
    %v984 = vpop.permute.xlu0 %983
    %987 = vrot.lane.b32.xlu0 %v959, 40
    %v988 = vpop.permute.xlu0 %987
    %991 = vrot.lane.b32.xlu0 %v962, 48
    %v992 = vpop.permute.xlu0 %991
    %995 = vrot.lane.b32.xlu0 %v964, 56
    %v996 = vpop.permute.xlu0 %995
    %999 = vrot.lane.b32.xlu0 %v967, 64
    %v1000 = vpop.permute.xlu0 %999
    %v1002 = vsel %vm734, %v947, %v972
    %v1003 = vsel %vm744, %v1002, %v976
    %v1004 = vsel %vm754, %v1003, %v980
    %v1005 = vsel %vm764, %v1004, %v984
    %vm1006 = vcmask 326656
    %v1007 = vsel %vm1006, %v1005, %v988
    %vm1008 = vcmask 392192
    %v1009 = vsel %vm1008, %v1007, %v992
    %vm1010 = vcmask 457728
    %v1011 = vsel %vm1010, %v1009, %v996
    %vm1012 = vcmask 523264
    %v1013 = vsel %vm1012, %v1011, %v1000
    %v1014 = vld [vmem:[%s2 + $0x1c] sm:$0xf]
    %v1015 = vld [vmem:[%s2 + $0x20] sm:$0xf]
    %v1016 = vld [vmem:[%s2 + $0x24] sm:$0xf]
    %v1017 = vld [vmem:[%s2 + $0x28] sm:$0xf]
    %v1018 = vld [vmem:[%s2 + $0x2c] sm:$0xf]
    %v1019 = vld [vmem:[%s2 + $0x30] sm:$0xf]
    %v1020 = vld [vmem:[%s2 + $0x34] sm:$0xf]
    %v1021 = vld [vmem:[%s2 + $0x38] sm:$0xf]
    %v1022 = vld [vmem:[%s2 + $0x3c] sm:$0xf]
    %v1023 = vpack.c.bf16 %v1013, %v1013
    %v1033 = vunpack.c.l.b16 %v1014
    %v1034 = vunpack.c.l.b16 %v1015
    %v1035 = vunpack.c.l.b16 %v1016
    %v1036 = vunpack.c.l.b16 %v1017
    %v1037 = vunpack.c.l.b16 %v1018
    %v1038 = vunpack.c.l.b16 %v1019
    %v1039 = vunpack.c.l.b16 %v1020
    %v1040 = vunpack.c.l.b16 %v1021
    %v1041 = vunpack.c.l.b16 %v1022
    %v1042 = vpack.c.b16 %v1034, %v1033
    %v1043 = vpack.c.b16 %v1036, %v1035
    %v1044 = vpack.c.b16 %v1038, %v1037
    %v1045 = vpack.c.b16 %v1040, %v1039
    %v1046 = vpack.c.b16 %v1041, %v1041
    %vm1051 = vcmask 588800
    %v1053 = vsel %vm1051, %v1023, 0
    %v1056 = vsel %vm107, %v1046, 0
    %1058 = vmatpush.bf16.msra.mxu0 0
    %1059 = vmatpush.bf16.msra.mxu0 0
    %1060 = vmatpush.bf16.msra.mxu0 0
    %1061 = vmatpush.bf16.msra.mxu0 %v1056
    %1062 = vmatpush.bf16.msra.mxu0 %v1045
    %1063 = vmatpush.bf16.msra.mxu0 %v1044
    %1064 = vmatpush.bf16.msra.mxu0 %v1043
    %1065 = vmatpush.bf16.msra.mxu0 %v1042
    %1066 = vmatmul.bf16.gmra.mxu0 %v1053
    %v1067 = vpop.f32.mrf.mxu0
    %v1068 = vadd.f32 0.0, %v1067
    %v1069 = vpop.f32.mrf.mxu0
    %1070 = vdwg.mxu0
    %v1071 = vld [vmem:[%s3 + $0x4] sm:$0x1]
    %v1072 = vld [vmem:[%s3 + $0x5] sm:$0x1]
    %v1073 = vsel %vm744, %v1068, 0.0
    %v1074 = vrot.slane %v1073, 4
    %v1075 = vadd.f32 %v1073, %v1074
    %v1076 = vrot.slane %v1075, 2
    %v1077 = vadd.f32 %v1075, %v1076
    %v1078 = vrot.slane %v1077, 1
    %v1079 = vadd.f32 %v1077, %v1078
    %v1080 = vmul.f32 %v1079, 0.125
    %v1081 = vsub.f32 %v1068, %v1080
    %v1082 = vmul.f32 %v1081, %v1081
    %v1083 = vsel %vm744, %v1082, 0.0
    %v1084 = vrot.slane %v1083, 4
    %v1085 = vadd.f32 %v1083, %v1084
    %v1086 = vrot.slane %v1085, 2
    %v1087 = vadd.f32 %v1085, %v1086
    %v1088 = vrot.slane %v1087, 1
    %v1089 = vadd.f32 %v1087, %v1088
    %v1090 = vmul.f32 %v1089, 0.125
    %v1091 = vadd.f32 %v1090, 1e-05
    %v1092 = vrsqrt.pop %v1091
    %v1093 = vmul.f32 %v1092, %v1091
    %v1094 = vmul.f32 %v1093, %v1092
    %v1095 = vmul.f32 0.5, %v1094
    %v1096 = vsub.f32 1.5, %v1095
    %v1097 = vmul.f32 %v1092, %v1096
    %vm1098 = vweird.f32 %v1091
    %vm1099 = vweird.f32 %v1092
    %vm1100 = vmor %vm1098, %vm1099
    %v1101 = vsel %vm1100, %v1092, %v1097
    %v1102 = vmul.f32 %v1081, %v1101
    %v1103 = vperm.slane %v1071, 0
    %v1104 = vmul.f32 %v1103, %v1102
    %v1105 = vperm.slane %v1072, 0
    %v1106 = vadd.f32 %v1104, %v1105
    %v1107 = vmax.f32 %v1106, 0.0
    %v1109 = vrot.slane %v1107, 4
    %1110 = vrot.lane.b32.xlu0 %v1109, 16
    %v1111 = vpop.permute.xlu0 %1110
    %v1113 = vsel %vm744, %v1107, %v1111
    %v1114 = vld [vmem:[%s2 + $0x40] sm:$0xf]
    %v1115 = vld [vmem:[%s2 + $0x44] sm:$0xf]
    %v1116 = vld [vmem:[%s2 + $0x48] sm:$0xf]
    %v1117 = vld [vmem:[%s2 + $0x4c] sm:$0xf]
    %v1118 = vld [vmem:[%s2 + $0x50] sm:$0xf]
    %v1119 = vld [vmem:[%s2 + $0x54] sm:$0xf]
    %v1120 = vld [vmem:[%s3 + $0x6] sm:$0x1]
    %v1121 = vld [vmem:[%s3 + $0x7] sm:$0x1]
    %v1122 = vpack.c.bf16 %v1113, %v1113
    %v1123 = vperm.slane %v1120, 0
    %v1128 = vunpack.c.l.b16 %v1114
    %v1129 = vunpack.c.l.b16 %v1115
    %v1130 = vunpack.c.l.b16 %v1116
    %v1131 = vunpack.c.l.b16 %v1117
    %v1132 = vpack.c.b16 %v1129, %v1128
    %v1133 = vpack.c.b16 %v1131, %v1130
    %v1137 = vsel %vm764, %v1122, 0
    %1139 = vmatpush.bf16.msra.mxu0 0
    %1140 = vmatpush.bf16.msra.mxu0 0
    %1141 = vmatpush.bf16.msra.mxu0 0
    %1142 = vmatpush.bf16.msra.mxu0 0
    %1143 = vmatpush.bf16.msra.mxu0 0
    %1144 = vmatpush.bf16.msra.mxu0 0
    %1145 = vmatpush.bf16.msra.mxu0 %v1133
    %1146 = vmatpush.bf16.msra.mxu0 %v1132
    %1147 = vmatmul.bf16.gmra.mxu0 %v1137
    %v1148 = vpop.f32.mrf.mxu0
    %v1149 = vadd.f32 %v1123, %v1148
    %v1150 = vpop.f32.mrf.mxu0
    %1151 = vdwg.mxu0
    %v1152 = vperm.slane %v1121, 0
    %v1153 = vadd.f32 %v1149, %v1152
    %v1154 = vxor.u32 %v1153, 2147483648
    %v1155 = vmul.f32 %v1154, 1.442695
    %v1156 = vpow.pop %v1155
    %v1157 = vadd.f32 %v1156, 1.0
    %v1158 = vrcp.pop %v1157
    %v1159 = vmul.f32 %v1157, %v1158
    %v1160 = vsub.f32 1.0, %v1159
    %v1161 = vmul.f32 %v1158, %v1160
    %v1162 = vadd.f32 %v1158, %v1161
    %vm1163 = vweird.f32 %v1157
    %vm1164 = vweird.f32 %v1158
    %vm1165 = vmor %vm1163, %vm1164
    %v1166 = vsel %vm1165, %v1158, %v1162
    %v1167 = vand.u32 2147483647, %v1157
    %vm1168 = vcmp.eq.f32.partialorder %v1167, 8.507059e+37
    %v1169 = vand.u32 %v1157, 2147483648
    %v1170 = vor.u32 1.1754944e-38, %v1169
    %v1171 = vsel %vm1168, %v1170, %v1166
    %v1172 = vmul.f32 1.0, %v1171
    %1174 = vrot.lane.b32.xlu0 %v1152, 96
    %v1175 = vpop.permute.xlu0 %1174
    %v1177 = vmul.f32 %v1172, %v1175
    %1179 = vrot.lane.b32.xlu0 %v1177, 32
    %v1180 = vpop.permute.xlu0 %1179
    %v1182 = vadd.f32 %v1149, %v1180
    %v1183 = vtanh.pop %v1182
    %v1184 = vsub.f32 1.0, %v1172
    %1186 = vrot.lane.b32.xlu0 %v1183, 112
    %v1187 = vpop.permute.xlu0 %1186
    %v1189 = vmul.f32 %v1184, %v1187
    %v1190 = vmul.f32 %v1172, 0.0
    %v1191 = vadd.f32 %v1189, %v1190
    %v1192 = vpack.c.bf16 %v1191, %v1191
    %1194 = vrot.lane.b32.xlu0 %v1192, 112
    %v1195 = vpop.permute.xlu0 %1194
    %v1198 = vunpack.c.l.b16 %v1118
    %v1199 = vunpack.c.l.b16 %v1119
    %v1200 = vpack.c.b16 %v1199, %v1198
    %v1203 = vsel %vm744, %v1195, 0
    %1205 = vmatpush.bf16.msra.mxu0 0
    %1206 = vmatpush.bf16.msra.mxu0 0
    %1207 = vmatpush.bf16.msra.mxu0 0
    %1208 = vmatpush.bf16.msra.mxu0 0
    %1209 = vmatpush.bf16.msra.mxu0 0
    %1210 = vmatpush.bf16.msra.mxu0 0
    %1211 = vmatpush.bf16.msra.mxu0 0
    %1212 = vmatpush.bf16.msra.mxu0 %v1200
    %1213 = vmatmul.bf16.gmra.mxu0 %v1203
    %v1214 = vpop.f32.mrf.mxu0
    %v1215 = vadd.f32 %v1152, %v1214
    %v1216 = vpop.f32.mrf.mxu0
    %1217 = vdwg.mxu0
    %v1219 = vrot.slane %v1215, 6
    %v1221 = vadd.f32 %v1149, %v1219
    %v1222 = vxor.u32 %v1221, 2147483648
    %v1223 = vmul.f32 %v1222, 1.442695
    %v1224 = vpow.pop %v1223
    %v1225 = vadd.f32 %v1224, 1.0
    %v1226 = vrcp.pop %v1225
    %v1227 = vmul.f32 %v1225, %v1226
    %v1228 = vsub.f32 1.0, %v1227
    %v1229 = vmul.f32 %v1226, %v1228
    %v1230 = vadd.f32 %v1226, %v1229
    %vm1231 = vweird.f32 %v1225
    %vm1232 = vweird.f32 %v1226
    %vm1233 = vmor %vm1231, %vm1232
    %v1234 = vsel %vm1233, %v1226, %v1230
    %v1235 = vand.u32 2147483647, %v1225
    %vm1236 = vcmp.eq.f32.partialorder %v1235, 8.507059e+37
    %v1237 = vand.u32 %v1225, 2147483648
    %v1238 = vor.u32 1.1754944e-38, %v1237
    %v1239 = vsel %vm1236, %v1238, %v1234
    %v1240 = vmul.f32 1.0, %v1239
    %1241 = vrot.lane.b32.xlu0 %v1219, 96
    %v1242 = vpop.permute.xlu0 %1241
    %v1244 = vmul.f32 %v1240, %v1242
    %1246 = vrot.lane.b32.xlu0 %v1244, 32
    %v1247 = vpop.permute.xlu0 %1246
    %v1249 = vadd.f32 %v1149, %v1247
    %v1250 = vtanh.pop %v1249
    %v1251 = vsub.f32 1.0, %v1240
    %1253 = vrot.lane.b32.xlu0 %v1250, 112
    %v1254 = vpop.permute.xlu0 %1253
    %v1256 = vmul.f32 %v1251, %v1254
    %v1258 = vrot.slane %v1191, 6
    %v1260 = vmul.f32 %v1240, %v1258
    %v1261 = vadd.f32 %v1256, %v1260
    %1263 = vrot.lane.b32.xlu0 %v1261, 112
    %v1264 = vpop.permute.xlu0 %1263
    %vm1266 = vcmask 125954
    %1267 = vst.msk [vmem:[#allocation2 - $0x2] sm:$0xc] %vm1266, %v1264
    // Predicated region
    $region18: #{_lambda_.1} parent=1 // pred_check
      _
    $region19: #{_lambda_.1} parent=1 // pred_check_branch
      %1269 = sbr.rel (0) target = $region21
    $region20: #{_lambda_.1} parent=1 // pred_region
      %1271 = vsyncadd [#allocation3], 0
      %s1273 = sshll.u32 [#allocation2], 4
      %s1274 = int_to_ptr.vmem [resolvable:$true] %s1273
      %s1275 = sshll.u32 %s4, 4
      %s1276 = int_to_ptr.hbm [resolvable:$true] %s1275
      %1278 = dma.vmem_to_hbm [thread:$0]  %s1274, 32, %s1276, [#allocation3]
    $region21: #{_lambda_.1} parent=1 // pred_fallthru
      _
    // Predicated region
    $region22: #{_lambda_.1} parent=1 // pred_check
      _
    $region23: #{_lambda_.1} parent=1 // pred_check_branch
      %1280 = sbr.rel (0) target = $region25
    $region24: #{_lambda_.1} parent=1 // pred_region
      %1282 = dma.done [#allocation3], 32
    $region25: #{_lambda_.1} parent=1 // pred_fallthru
      _
    %1283 = vsyncpa [#allocation3], 1

</llo_original>
